<compile_context>
chip_gen: v7x
topology: tpu7x:2x2x1
jax: 0.10.0
libtpu: 0.0.40
codegen_flags: <defaults>
</compile_context>

<pallas_src>
import functools

import jax
import jax.numpy as jnp
from jax import lax
from jax.experimental import pallas as pl
from jax.experimental.pallas import tpu as pltpu

HIDDEN = 64

# lane positions inside the packed per-agent output slab
_COL_ACTION, _COL_OPTION, _COL_BETA, _COL_LOGP, _COL_ENT = 0, 1, 2, 3, 4


def _oc_kernel(u_ref, opts_ref, x_ref, w1_ref, b1_ref, w2_ref, b2_ref,
               w3_ref, b3_ref, wh_ref, bh_ref, out_ref, q_ref,
               *, A, O, K, eps):
    f32 = jnp.float32
    AO = A * O
    AOK = A * O * K

    # ---- uniforms: one lane-dense slab, 4 lanes used per agent ----
    u = u_ref[...]                               # (A, 128) in [0, 1)
    u_term = u[:, 0:1]                           # bernoulli(beta) draw
    u_eps = u[:, 1:2]                            # eps-greedy draw
    u_ropt = u[:, 2:3]                           # random-option draw
    u_act = u[:, 3:4]                            # multinomial draw

    # ---- state_features: 3 x (Linear + ReLU) ----
    h = jnp.maximum(
        jnp.dot(x_ref[...], w1_ref[...], preferred_element_type=f32) + b1_ref[...], 0.0)
    h = jnp.maximum(
        jnp.dot(h, w2_ref[...], preferred_element_type=f32) + b2_ref[...], 0.0)
    h = jnp.maximum(
        jnp.dot(h, w3_ref[...], preferred_element_type=f32) + b3_ref[...], 0.0)

    # ---- fused heads: one matmul with lane blocks [ Q | termination | policy ] ----
    head = jnp.dot(h, wh_ref[...], preferred_element_type=f32) + bh_ref[...]  # (1, 2*AO+AOK)
    q_out = head[:, :AO]                 # (1, A*O)
    term_out = head[:, AO:2 * AO]        # (1, A*O)
    pi_out = head[:, 2 * AO:]            # (1, A*O*K)

    q_ref[...] = q_out

    # ---- vectorized over agents: agent index lives in the sublane dimension ----
    opts = opts_ref[...]                                        # (A, 1) int32
    col_ao = lax.broadcasted_iota(jnp.int32, (A, AO), 1)
    row_ao = lax.broadcasted_iota(jnp.int32, (A, AO), 0)
    rowA = lax.broadcasted_iota(jnp.int32, (A, 1), 0)

    # termination probability of the *old* option per agent
    sel_old = col_ao == row_ao * O + opts                       # (A, AO)
    beta_logit = jnp.sum(jnp.where(sel_old, term_out, 0.0), axis=-1, keepdims=True)
    beta = 1.0 / (1.0 + jnp.exp(-beta_logit))                   # (A, 1)
    terminate = u_term < beta                                   # bernoulli(beta)

    # greedy option: first-index argmax over each agent's Q slice
    in_agent = (col_ao >= row_ao * O) & (col_ao < (row_ao + 1) * O)
    q_m = jnp.where(in_agent, q_out, -1e30)                     # (A, AO)
    q_max = jnp.max(q_m, axis=-1, keepdims=True)
    is_max = (q_m == q_max) & in_agent
    greedy = jnp.min(jnp.where(is_max, col_ao, AO), axis=-1, keepdims=True) - rowA * O

    # eps-greedy potential option; switch only if terminated
    rand_opt = jnp.minimum(jnp.floor(u_ropt * O).astype(jnp.int32), O - 1)
    potential = jnp.where(u_eps < eps, rand_opt, greedy)        # (A, 1)
    new_opts = jnp.where(terminate, potential, opts)            # (A, 1) int32

    # gather the K policy logits of (agent, new option): lane-mask the selected
    # K-wide block, then fold the AO blocks onto K lanes (pure VPU adds, no MXU).
    col_aok = lax.broadcasted_iota(jnp.int32, (A, AOK), 1)
    row_aok = lax.broadcasted_iota(jnp.int32, (A, AOK), 0)
    start = (row_aok * O + new_opts) * K                        # (A, AOK)
    in_blk = (col_aok >= start) & (col_aok < start + K)
    masked_pi = jnp.where(in_blk, pi_out, 0.0)                  # (A, AOK)
    logits = masked_pi[:, 0:K]
    for m in range(1, AO):                                      # AO is tiny & static
        logits = logits + masked_pi[:, m * K:(m + 1) * K]       # (A, K)

    # softmax over actions
    mx = jnp.max(logits, axis=-1, keepdims=True)
    e = jnp.exp(logits - mx)
    p = e / jnp.sum(e, axis=-1, keepdims=True)                  # (A, K)

    # multinomial(p, 1) via inverse CDF; inclusive cumsum = p @ tri (one MXU push,
    # shared by all agents)
    tri = (lax.broadcasted_iota(jnp.int32, (K, K), 0)
           <= lax.broadcasted_iota(jnp.int32, (K, K), 1)).astype(f32)
    c = jnp.dot(p, tri, preferred_element_type=f32)             # (A, K)
    action = jnp.minimum(
        jnp.sum((c <= u_act).astype(jnp.int32), axis=-1, keepdims=True), K - 1)

    # torch applies log_softmax to the already-softmaxed probs -> reproduce exactly
    pm = jnp.max(p, axis=-1, keepdims=True)
    lse = pm + jnp.log(jnp.sum(jnp.exp(p - pm), axis=-1, keepdims=True))
    lp = p - lse                                                # (A, K)
    col_k = lax.broadcasted_iota(jnp.int32, (A, K), 1)
    logp = jnp.sum(jnp.where(col_k == action, lp, 0.0), axis=-1, keepdims=True)
    ent = jnp.sum(-lp * jnp.exp(lp), axis=-1, keepdims=True)

    # ---- pack the five per-agent results into one lane-dense slab, single store ----
    lane = lax.broadcasted_iota(jnp.int32, (A, 128), 1)
    packed = (jnp.where(lane == _COL_ACTION, action.astype(f32), 0.0)
              + jnp.where(lane == _COL_OPTION, new_opts.astype(f32), 0.0)
              + jnp.where(lane == _COL_BETA, beta, 0.0)
              + jnp.where(lane == _COL_LOGP, logp, 0.0)
              + jnp.where(lane == _COL_ENT, ent, 0.0))
    out_ref[...] = packed


def fuse_head_params(params):
    """Concatenate the Q / termination / policy head weights into one matmul (done once)."""
    w1, b1, w2, b2, w3, b3, wq, bq, wpi, bpi, wt, bt = params
    wh = jnp.concatenate([wq, wt, wpi], axis=1)
    bh = jnp.concatenate([bq, bt, bpi], axis=1)
    return (w1, b1, w2, b2, w3, b3, wh, bh)


def make_option_critic_forward(in_features, num_actions, num_options, num_agents, eps):
    A, O, K = num_agents, num_options, num_actions
    kernel = functools.partial(_oc_kernel, A=A, O=O, K=K, eps=float(eps))

    vmem = pl.BlockSpec(memory_space=pltpu.MemorySpace.VMEM)

    out_shapes = (
        jax.ShapeDtypeStruct((A, 128), jnp.float32),    # packed per-agent results
        jax.ShapeDtypeStruct((1, A * O), jnp.float32),  # q
    )
    call = pl.pallas_call(
        kernel,
        out_shape=out_shapes,
        in_specs=[vmem] * 11,
        out_specs=(vmem, vmem),
    )

    @jax.jit
    def forward(fused_params, state, current_options, rng_key):
        w1, b1, w2, b2, w3, b3, wh, bh = fused_params
        x = jnp.asarray(state, jnp.float32).reshape(1, -1)            # torch: unsqueeze(0)
        opts = jnp.asarray(current_options, jnp.int32).reshape(A, 1)
        # all random draws for this step, generated on-device inside the same jit
        u = jax.random.uniform(rng_key, (A, 128), jnp.float32)
        packed, q = call(u, opts, x, w1, b1, w2, b2, w3, b3, wh, bh)
        actions = packed[:, _COL_ACTION:_COL_ACTION + 1].astype(jnp.int32)   # (A, 1)
        new_opts = packed[:, _COL_OPTION:_COL_OPTION + 1].astype(jnp.int32)  # (A, 1)
        beta_w = packed[:, _COL_BETA:_COL_BETA + 1]                          # (A, 1)
        logprob = packed[:, _COL_LOGP]                                       # (A,)
        entropy = packed[:, _COL_ENT]                                        # (A,)
        return actions, new_opts, beta_w, logprob, entropy, q

    return forward


def _linear_params(key, fan_in, fan_out):
    # deterministic init mimicking torch.nn.Linear default (uniform +-1/sqrt(fan_in))
    kw, kb = jax.random.split(key)
    bound = 1.0 / (fan_in ** 0.5)
    w = jax.random.uniform(kw, (fan_in, fan_out), jnp.float32, -bound, bound)
    b = jax.random.uniform(kb, (1, fan_out), jnp.float32, -bound, bound)
    return w, b


if __name__ == "__main__":
    in_features, num_actions, num_options, num_agents = 32, 8, 4, 2

    key = jax.random.PRNGKey(0)
    keys = jax.random.split(key, 10)

    w1, b1 = _linear_params(keys[0], in_features, HIDDEN)
    w2, b2 = _linear_params(keys[1], HIDDEN, HIDDEN)
    w3, b3 = _linear_params(keys[2], HIDDEN, HIDDEN)
    wq, bq = _linear_params(keys[3], HIDDEN, num_agents * num_options)
    wpi, bpi = _linear_params(keys[4], HIDDEN, num_agents * num_options * num_actions)
    wt, bt = _linear_params(keys[5], HIDDEN, num_agents * num_options)
    params = (w1, b1, w2, b2, w3, b3, wq, bq, wpi, bpi, wt, bt)
    fused = fuse_head_params(params)   # head fusion done once, off the per-step path

    state = jax.random.normal(keys[6], (in_features,), jnp.float32)
    current_options = jax.random.randint(keys[7], (num_agents,), 0, num_options, jnp.int32)

    # eps property: num_steps -> 1 on the first forward call
    num_steps, duration, eps_start, eps_min = 1, 150000, 1.0, 0.01
    eps = eps_start + (eps_min - eps_start) / duration * num_steps

    forward = make_option_critic_forward(in_features, num_actions, num_options,
                                         num_agents, eps)
    outs = forward(fused, state, current_options, keys[8])
    outs = jax.block_until_ready(outs)

    actions, new_options, beta_w, logprob, entropy, q = outs
    assert actions.shape == (num_agents, 1) and actions.dtype == jnp.int32
    assert new_options.shape == (num_agents, 1) and new_options.dtype == jnp.int32
    assert beta_w.shape == (num_agents, 1)
    assert logprob.shape == (num_agents,)
    assert entropy.shape == (num_agents,)
    assert q.shape == (1, num_agents * num_options)
    assert int(actions.min()) >= 0 and int(actions.max()) < num_actions
    assert int(new_options.min()) >= 0 and int(new_options.max()) < num_options
    assert bool(jnp.all((beta_w > 0.0) & (beta_w < 1.0)))
    assert bool(jnp.all(logprob <= 0.0)) and bool(jnp.all(entropy >= 0.0))
    assert bool(jnp.all(jnp.isfinite(q)))
    print("KERNEL_OK")
</pallas_src>

<mosaic_0001>
module attributes {stable_mosaic.version = 11 : i64} {
  func.func @_oc_kernel(%arg0: memref<2x128xf32, #tpu.memory_space<vmem>>, %arg1: memref<2x1xi32, #tpu.memory_space<vmem>>, %arg2: memref<1x32xf32, #tpu.memory_space<vmem>>, %arg3: memref<32x64xf32, #tpu.memory_space<vmem>>, %arg4: memref<1x64xf32, #tpu.memory_space<vmem>>, %arg5: memref<64x64xf32, #tpu.memory_space<vmem>>, %arg6: memref<1x64xf32, #tpu.memory_space<vmem>>, %arg7: memref<64x64xf32, #tpu.memory_space<vmem>>, %arg8: memref<1x64xf32, #tpu.memory_space<vmem>>, %arg9: memref<64x80xf32, #tpu.memory_space<vmem>>, %arg10: memref<1x80xf32, #tpu.memory_space<vmem>>, %arg11: memref<2x128xf32, #tpu.memory_space<vmem>>, %arg12: memref<1x8xf32, #tpu.memory_space<vmem>>) attributes {dimension_semantics = [], scalar_prefetch = 0 : i64, scratch_operands = 0 : i64, tpu.core_type = #tpu.core_type<tc>} {
    %c0 = arith.constant 0 : index
    %c0_0 = arith.constant 0 : index
    %0 = vector.load %arg0[%c0, %c0_0] : memref<2x128xf32, #tpu.memory_space<vmem>>, vector<2x128xf32>
    %1 = vector.extract_strided_slice %0 {offsets = [0, 0], sizes = [2, 1], strides = [1, 1]} : vector<2x128xf32> to vector<2x1xf32>
    %2 = vector.extract_strided_slice %0 {offsets = [0, 1], sizes = [2, 1], strides = [1, 1]} : vector<2x128xf32> to vector<2x1xf32>
    %3 = vector.extract_strided_slice %0 {offsets = [0, 2], sizes = [2, 1], strides = [1, 1]} : vector<2x128xf32> to vector<2x1xf32>
    %4 = vector.extract_strided_slice %0 {offsets = [0, 3], sizes = [2, 1], strides = [1, 1]} : vector<2x128xf32> to vector<2x1xf32>
    %c0_1 = arith.constant 0 : index
    %c0_2 = arith.constant 0 : index
    %5 = vector.load %arg2[%c0_1, %c0_2] : memref<1x32xf32, #tpu.memory_space<vmem>>, vector<1x32xf32>
    %c0_3 = arith.constant 0 : index
    %c0_4 = arith.constant 0 : index
    %6 = vector.load %arg3[%c0_3, %c0_4] : memref<32x64xf32, #tpu.memory_space<vmem>>, vector<32x64xf32>
    %cst = arith.constant dense<0.000000e+00> : vector<1x64xf32>
    %7 = tpu.matmul %5, %6, %cst {dimension_numbers = #tpu.dot_dimension_numbers<[1], [0], [0], [1], [0, 0, 1, 1], [], []>} : vector<1x32xf32>, vector<32x64xf32>, vector<1x64xf32> -> vector<1x64xf32>
    %c0_5 = arith.constant 0 : index
    %c0_6 = arith.constant 0 : index
    %8 = vector.load %arg4[%c0_5, %c0_6] : memref<1x64xf32, #tpu.memory_space<vmem>>, vector<1x64xf32>
    %9 = arith.addf %7, %8 : vector<1x64xf32>
    %cst_7 = arith.constant 0.000000e+00 : f32
    %10 = vector.broadcast %cst_7 : f32 to vector<1x64xf32>
    %11 = arith.maximumf %9, %10 : vector<1x64xf32>
    %c0_8 = arith.constant 0 : index
    %c0_9 = arith.constant 0 : index
    %12 = vector.load %arg5[%c0_8, %c0_9] : memref<64x64xf32, #tpu.memory_space<vmem>>, vector<64x64xf32>
    %cst_10 = arith.constant dense<0.000000e+00> : vector<1x64xf32>
    %13 = tpu.matmul %11, %12, %cst_10 {dimension_numbers = #tpu.dot_dimension_numbers<[1], [0], [0], [1], [0, 0, 1, 1], [], []>} : vector<1x64xf32>, vector<64x64xf32>, vector<1x64xf32> -> vector<1x64xf32>
    %c0_11 = arith.constant 0 : index
    %c0_12 = arith.constant 0 : index
    %14 = vector.load %arg6[%c0_11, %c0_12] : memref<1x64xf32, #tpu.memory_space<vmem>>, vector<1x64xf32>
    %15 = arith.addf %13, %14 : vector<1x64xf32>
    %cst_13 = arith.constant 0.000000e+00 : f32
    %16 = vector.broadcast %cst_13 : f32 to vector<1x64xf32>
    %17 = arith.maximumf %15, %16 : vector<1x64xf32>
    %c0_14 = arith.constant 0 : index
    %c0_15 = arith.constant 0 : index
    %18 = vector.load %arg7[%c0_14, %c0_15] : memref<64x64xf32, #tpu.memory_space<vmem>>, vector<64x64xf32>
    %cst_16 = arith.constant dense<0.000000e+00> : vector<1x64xf32>
    %19 = tpu.matmul %17, %18, %cst_16 {dimension_numbers = #tpu.dot_dimension_numbers<[1], [0], [0], [1], [0, 0, 1, 1], [], []>} : vector<1x64xf32>, vector<64x64xf32>, vector<1x64xf32> -> vector<1x64xf32>
    %c0_17 = arith.constant 0 : index
    %c0_18 = arith.constant 0 : index
    %20 = vector.load %arg8[%c0_17, %c0_18] : memref<1x64xf32, #tpu.memory_space<vmem>>, vector<1x64xf32>
    %21 = arith.addf %19, %20 : vector<1x64xf32>
    %cst_19 = arith.constant 0.000000e+00 : f32
    %22 = vector.broadcast %cst_19 : f32 to vector<1x64xf32>
    %23 = arith.maximumf %21, %22 : vector<1x64xf32>
    %c0_20 = arith.constant 0 : index
    %c0_21 = arith.constant 0 : index
    %24 = vector.load %arg9[%c0_20, %c0_21] : memref<64x80xf32, #tpu.memory_space<vmem>>, vector<64x80xf32>
    %cst_22 = arith.constant dense<0.000000e+00> : vector<1x80xf32>
    %25 = tpu.matmul %23, %24, %cst_22 {dimension_numbers = #tpu.dot_dimension_numbers<[1], [0], [0], [1], [0, 0, 1, 1], [], []>} : vector<1x64xf32>, vector<64x80xf32>, vector<1x80xf32> -> vector<1x80xf32>
    %c0_23 = arith.constant 0 : index
    %c0_24 = arith.constant 0 : index
    %26 = vector.load %arg10[%c0_23, %c0_24] : memref<1x80xf32, #tpu.memory_space<vmem>>, vector<1x80xf32>
    %27 = arith.addf %25, %26 : vector<1x80xf32>
    %28 = vector.extract_strided_slice %27 {offsets = [0, 0], sizes = [1, 8], strides = [1, 1]} : vector<1x80xf32> to vector<1x8xf32>
    %29 = vector.extract_strided_slice %27 {offsets = [0, 8], sizes = [1, 8], strides = [1, 1]} : vector<1x80xf32> to vector<1x8xf32>
    %30 = vector.extract_strided_slice %27 {offsets = [0, 16], sizes = [1, 64], strides = [1, 1]} : vector<1x80xf32> to vector<1x64xf32>
    %c0_25 = arith.constant 0 : index
    %c0_26 = arith.constant 0 : index
    %31 = vector.load %arg12[%c0_25, %c0_26] : memref<1x8xf32, #tpu.memory_space<vmem>>, vector<1x8xf32>
    tpu.vector_store %arg12[%c0_25, %c0_26], %28 {strides = array<i32>} : memref<1x8xf32, #tpu.memory_space<vmem>>, vector<1x8xf32>,
    %c0_27 = arith.constant 0 : index
    %c0_28 = arith.constant 0 : index
    %32 = vector.load %arg1[%c0_27, %c0_28] : memref<2x1xi32, #tpu.memory_space<vmem>>, vector<2x1xi32>
    %33 = tpu.iota {dimensions = array<i32: 1>} : vector<2x8xi32>
    %34 = tpu.iota {dimensions = array<i32: 0>} : vector<2x8xi32>
    %35 = tpu.iota {dimensions = array<i32: 0>} : vector<2x1xi32>
    %c4_i32 = arith.constant 4 : i32
    %36 = vector.broadcast %c4_i32 : i32 to vector<2x8xi32>
    %37 = arith.muli %34, %36 : vector<2x8xi32>
    %38 = vector.broadcast %32 : vector<2x1xi32> to vector<2x8xi32>
    %39 = arith.addi %37, %38 : vector<2x8xi32>
    %40 = arith.cmpi eq, %33, %39 : vector<2x8xi32>
    %cst_29 = arith.constant 0.000000e+00 : f32
    %41 = vector.shape_cast %29 : vector<1x8xf32> to vector<1x8xf32>
    %42 = vector.broadcast %41 : vector<1x8xf32> to vector<2x8xf32>
    %43 = vector.broadcast %cst_29 : f32 to vector<2x8xf32>
    %44 = arith.select %40, %42, %43 : vector<2x8xi1>, vector<2x8xf32>
    %cst_30 = arith.constant dense<0.000000e+00> : vector<2xf32>
    %45 = vector.multi_reduction <add>, %44, %cst_30 [1] : vector<2x8xf32> to vector<2xf32>
    %46 = vector.shape_cast %45 : vector<2xf32> to vector<2x1xf32>
    %cst_31 = arith.constant 0.000000e+00 : f32
    %47 = vector.broadcast %cst_31 : f32 to vector<2x1xf32>
    %48 = arith.subf %47, %46 : vector<2x1xf32>
    %49 = math.exp %48 : vector<2x1xf32>
    %cst_32 = arith.constant 1.000000e+00 : f32
    %50 = vector.broadcast %cst_32 : f32 to vector<2x1xf32>
    %51 = arith.addf %50, %49 : vector<2x1xf32>
    %cst_33 = arith.constant 1.000000e+00 : f32
    %52 = vector.broadcast %cst_33 : f32 to vector<2x1xf32>
    %53 = arith.divf %52, %51 : vector<2x1xf32>
    %54 = arith.cmpf olt, %1, %53 : vector<2x1xf32>
    %c4_i32_34 = arith.constant 4 : i32
    %55 = vector.broadcast %c4_i32_34 : i32 to vector<2x8xi32>
    %56 = arith.muli %34, %55 : vector<2x8xi32>
    %57 = arith.cmpi sge, %33, %56 : vector<2x8xi32>
    %c1_i32 = arith.constant 1 : i32
    %58 = vector.broadcast %c1_i32 : i32 to vector<2x8xi32>
    %59 = arith.addi %34, %58 : vector<2x8xi32>
    %c4_i32_35 = arith.constant 4 : i32
    %60 = vector.broadcast %c4_i32_35 : i32 to vector<2x8xi32>
    %61 = arith.muli %59, %60 : vector<2x8xi32>
    %62 = arith.cmpi slt, %33, %61 : vector<2x8xi32>
    %63 = arith.andi %57, %62 : vector<2x8xi1>
    %cst_36 = arith.constant -1.000000e+30 : f32
    %64 = vector.shape_cast %28 : vector<1x8xf32> to vector<1x8xf32>
    %65 = vector.broadcast %64 : vector<1x8xf32> to vector<2x8xf32>
    %66 = vector.broadcast %cst_36 : f32 to vector<2x8xf32>
    %67 = arith.select %63, %65, %66 : vector<2x8xi1>, vector<2x8xf32>
    %cst_37 = arith.constant dense<0xFF800000> : vector<2xf32>
    %68 = vector.multi_reduction <maximumf>, %67, %cst_37 [1] : vector<2x8xf32> to vector<2xf32>
    %69 = vector.shape_cast %68 : vector<2xf32> to vector<2x1xf32>
    %70 = vector.broadcast %69 : vector<2x1xf32> to vector<2x8xf32>
    %71 = arith.cmpf oeq, %67, %70 : vector<2x8xf32>
    %72 = arith.andi %71, %63 : vector<2x8xi1>
    %c8_i32 = arith.constant 8 : i32
    %73 = vector.broadcast %c8_i32 : i32 to vector<2x8xi32>
    %74 = arith.select %72, %33, %73 : vector<2x8xi1>, vector<2x8xi32>
    %cst_38 = arith.constant dense<2147483647> : vector<2xi32>
    %75 = vector.multi_reduction <minsi>, %74, %cst_38 [1] : vector<2x8xi32> to vector<2xi32>
    %76 = vector.shape_cast %75 : vector<2xi32> to vector<2x1xi32>
    %c4_i32_39 = arith.constant 4 : i32
    %77 = vector.broadcast %c4_i32_39 : i32 to vector<2x1xi32>
    %78 = arith.muli %35, %77 : vector<2x1xi32>
    %79 = arith.subi %76, %78 : vector<2x1xi32>
    %cst_40 = arith.constant 4.000000e+00 : f32
    %80 = vector.broadcast %cst_40 : f32 to vector<2x1xf32>
    %81 = arith.mulf %3, %80 : vector<2x1xf32>
    %82 = math.floor %81 : vector<2x1xf32>
    %83 = arith.fptosi %82 : vector<2x1xf32> to vector<2x1xi32>
    %c3_i32 = arith.constant 3 : i32
    %84 = vector.broadcast %c3_i32 : i32 to vector<2x1xi32>
    %85 = arith.minsi %83, %84 : vector<2x1xi32>
    %cst_41 = arith.constant 0.999993383 : f32
    %86 = vector.broadcast %cst_41 : f32 to vector<2x1xf32>
    %87 = arith.cmpf olt, %2, %86 : vector<2x1xf32>
    %88 = arith.select %87, %85, %79 : vector<2x1xi1>, vector<2x1xi32>
    %89 = arith.select %54, %88, %32 : vector<2x1xi1>, vector<2x1xi32>
    %90 = tpu.iota {dimensions = array<i32: 1>} : vector<2x64xi32>
    %91 = tpu.iota {dimensions = array<i32: 0>} : vector<2x64xi32>
    %c4_i32_42 = arith.constant 4 : i32
    %92 = vector.broadcast %c4_i32_42 : i32 to vector<2x64xi32>
    %93 = arith.muli %91, %92 : vector<2x64xi32>
    %94 = vector.broadcast %89 : vector<2x1xi32> to vector<2x64xi32>
    %95 = arith.addi %93, %94 : vector<2x64xi32>
    %c8_i32_43 = arith.constant 8 : i32
    %96 = vector.broadcast %c8_i32_43 : i32 to vector<2x64xi32>
    %97 = arith.muli %95, %96 : vector<2x64xi32>
    %98 = arith.cmpi sge, %90, %97 : vector<2x64xi32>
    %c8_i32_44 = arith.constant 8 : i32
    %99 = vector.broadcast %c8_i32_44 : i32 to vector<2x64xi32>
    %100 = arith.addi %97, %99 : vector<2x64xi32>
    %101 = arith.cmpi slt, %90, %100 : vector<2x64xi32>
    %102 = arith.andi %98, %101 : vector<2x64xi1>
    %cst_45 = arith.constant 0.000000e+00 : f32
    %103 = vector.shape_cast %30 : vector<1x64xf32> to vector<1x64xf32>
    %104 = vector.broadcast %103 : vector<1x64xf32> to vector<2x64xf32>
    %105 = vector.broadcast %cst_45 : f32 to vector<2x64xf32>
    %106 = arith.select %102, %104, %105 : vector<2x64xi1>, vector<2x64xf32>
    %107 = vector.extract_strided_slice %106 {offsets = [0, 0], sizes = [2, 8], strides = [1, 1]} : vector<2x64xf32> to vector<2x8xf32>
    %108 = vector.extract_strided_slice %106 {offsets = [0, 8], sizes = [2, 8], strides = [1, 1]} : vector<2x64xf32> to vector<2x8xf32>
    %109 = arith.addf %107, %108 : vector<2x8xf32>
    %110 = vector.extract_strided_slice %106 {offsets = [0, 16], sizes = [2, 8], strides = [1, 1]} : vector<2x64xf32> to vector<2x8xf32>
    %111 = arith.addf %109, %110 : vector<2x8xf32>
    %112 = vector.extract_strided_slice %106 {offsets = [0, 24], sizes = [2, 8], strides = [1, 1]} : vector<2x64xf32> to vector<2x8xf32>
    %113 = arith.addf %111, %112 : vector<2x8xf32>
    %114 = vector.extract_strided_slice %106 {offsets = [0, 32], sizes = [2, 8], strides = [1, 1]} : vector<2x64xf32> to vector<2x8xf32>
    %115 = arith.addf %113, %114 : vector<2x8xf32>
    %116 = vector.extract_strided_slice %106 {offsets = [0, 40], sizes = [2, 8], strides = [1, 1]} : vector<2x64xf32> to vector<2x8xf32>
    %117 = arith.addf %115, %116 : vector<2x8xf32>
    %118 = vector.extract_strided_slice %106 {offsets = [0, 48], sizes = [2, 8], strides = [1, 1]} : vector<2x64xf32> to vector<2x8xf32>
    %119 = arith.addf %117, %118 : vector<2x8xf32>
    %120 = vector.extract_strided_slice %106 {offsets = [0, 56], sizes = [2, 8], strides = [1, 1]} : vector<2x64xf32> to vector<2x8xf32>
    %121 = arith.addf %119, %120 : vector<2x8xf32>
    %cst_46 = arith.constant dense<0xFF800000> : vector<2xf32>
    %122 = vector.multi_reduction <maximumf>, %121, %cst_46 [1] : vector<2x8xf32> to vector<2xf32>
    %123 = vector.shape_cast %122 : vector<2xf32> to vector<2x1xf32>
    %124 = vector.broadcast %123 : vector<2x1xf32> to vector<2x8xf32>
    %125 = arith.subf %121, %124 : vector<2x8xf32>
    %126 = math.exp %125 : vector<2x8xf32>
    %cst_47 = arith.constant dense<0.000000e+00> : vector<2xf32>
    %127 = vector.multi_reduction <add>, %126, %cst_47 [1] : vector<2x8xf32> to vector<2xf32>
    %128 = vector.shape_cast %127 : vector<2xf32> to vector<2x1xf32>
    %129 = vector.broadcast %128 : vector<2x1xf32> to vector<2x8xf32>
    %130 = arith.divf %126, %129 : vector<2x8xf32>
    %131 = tpu.iota {dimensions = array<i32: 0>} : vector<8x8xi32>
    %132 = tpu.iota {dimensions = array<i32: 1>} : vector<8x8xi32>
    %133 = arith.cmpi sle, %131, %132 : vector<8x8xi32>
    %134 = arith.extui %133 : vector<8x8xi1> to vector<8x8xi32>
    %135 = arith.sitofp %134 : vector<8x8xi32> to vector<8x8xf32>
    %cst_48 = arith.constant dense<0.000000e+00> : vector<2x8xf32>
    %136 = tpu.matmul %130, %135, %cst_48 {dimension_numbers = #tpu.dot_dimension_numbers<[1], [0], [0], [1], [0, 0, 1, 1], [], []>} : vector<2x8xf32>, vector<8x8xf32>, vector<2x8xf32> -> vector<2x8xf32>
    %137 = vector.broadcast %4 : vector<2x1xf32> to vector<2x8xf32>
    %138 = arith.cmpf ole, %136, %137 : vector<2x8xf32>
    %139 = arith.extui %138 : vector<2x8xi1> to vector<2x8xi32>
    %cst_49 = arith.constant dense<0> : vector<2xi32>
    %140 = vector.multi_reduction <add>, %139, %cst_49 [1] : vector<2x8xi32> to vector<2xi32>
    %141 = vector.shape_cast %140 : vector<2xi32> to vector<2x1xi32>
    %c7_i32 = arith.constant 7 : i32
    %142 = vector.broadcast %c7_i32 : i32 to vector<2x1xi32>
    %143 = arith.minsi %141, %142 : vector<2x1xi32>
    %cst_50 = arith.constant dense<0xFF800000> : vector<2xf32>
    %144 = vector.multi_reduction <maximumf>, %130, %cst_50 [1] : vector<2x8xf32> to vector<2xf32>
    %145 = vector.shape_cast %144 : vector<2xf32> to vector<2x1xf32>
    %146 = vector.broadcast %145 : vector<2x1xf32> to vector<2x8xf32>
    %147 = arith.subf %130, %146 : vector<2x8xf32>
    %148 = math.exp %147 : vector<2x8xf32>
    %cst_51 = arith.constant dense<0.000000e+00> : vector<2xf32>
    %149 = vector.multi_reduction <add>, %148, %cst_51 [1] : vector<2x8xf32> to vector<2xf32>
    %150 = vector.shape_cast %149 : vector<2xf32> to vector<2x1xf32>
    %151 = math.log %150 : vector<2x1xf32>
    %152 = arith.addf %145, %151 : vector<2x1xf32>
    %153 = vector.broadcast %152 : vector<2x1xf32> to vector<2x8xf32>
    %154 = arith.subf %130, %153 : vector<2x8xf32>
    %155 = tpu.iota {dimensions = array<i32: 1>} : vector<2x8xi32>
    %156 = vector.broadcast %143 : vector<2x1xi32> to vector<2x8xi32>
    %157 = arith.cmpi eq, %155, %156 : vector<2x8xi32>
    %cst_52 = arith.constant 0.000000e+00 : f32
    %158 = vector.broadcast %cst_52 : f32 to vector<2x8xf32>
    %159 = arith.select %157, %154, %158 : vector<2x8xi1>, vector<2x8xf32>
    %cst_53 = arith.constant dense<0.000000e+00> : vector<2xf32>
    %160 = vector.multi_reduction <add>, %159, %cst_53 [1] : vector<2x8xf32> to vector<2xf32>
    %161 = vector.shape_cast %160 : vector<2xf32> to vector<2x1xf32>
    %cst_54 = arith.constant 0.000000e+00 : f32
    %162 = vector.broadcast %cst_54 : f32 to vector<2x8xf32>
    %163 = arith.subf %162, %154 : vector<2x8xf32>
    %164 = math.exp %154 : vector<2x8xf32>
    %165 = arith.mulf %163, %164 : vector<2x8xf32>
    %cst_55 = arith.constant dense<0.000000e+00> : vector<2xf32>
    %166 = vector.multi_reduction <add>, %165, %cst_55 [1] : vector<2x8xf32> to vector<2xf32>
    %167 = vector.shape_cast %166 : vector<2xf32> to vector<2x1xf32>
    %168 = tpu.iota {dimensions = array<i32: 1>} : vector<2x128xi32>
    %c0_i32 = arith.constant 0 : i32
    %169 = vector.broadcast %c0_i32 : i32 to vector<2x128xi32>
    %170 = arith.cmpi eq, %168, %169 : vector<2x128xi32>
    %171 = arith.sitofp %143 : vector<2x1xi32> to vector<2x1xf32>
    %cst_56 = arith.constant 0.000000e+00 : f32
    %172 = vector.shape_cast %171 : vector<2x1xf32> to vector<2x1xf32>
    %173 = vector.broadcast %172 : vector<2x1xf32> to vector<2x128xf32>
    %174 = vector.broadcast %cst_56 : f32 to vector<2x128xf32>
    %175 = arith.select %170, %173, %174 : vector<2x128xi1>, vector<2x128xf32>
    %c1_i32_57 = arith.constant 1 : i32
    %176 = vector.broadcast %c1_i32_57 : i32 to vector<2x128xi32>
    %177 = arith.cmpi eq, %168, %176 : vector<2x128xi32>
    %178 = arith.sitofp %89 : vector<2x1xi32> to vector<2x1xf32>
    %cst_58 = arith.constant 0.000000e+00 : f32
    %179 = vector.shape_cast %178 : vector<2x1xf32> to vector<2x1xf32>
    %180 = vector.broadcast %179 : vector<2x1xf32> to vector<2x128xf32>
    %181 = vector.broadcast %cst_58 : f32 to vector<2x128xf32>
    %182 = arith.select %177, %180, %181 : vector<2x128xi1>, vector<2x128xf32>
    %183 = arith.addf %175, %182 : vector<2x128xf32>
    %c2_i32 = arith.constant 2 : i32
    %184 = vector.broadcast %c2_i32 : i32 to vector<2x128xi32>
    %185 = arith.cmpi eq, %168, %184 : vector<2x128xi32>
    %cst_59 = arith.constant 0.000000e+00 : f32
    %186 = vector.shape_cast %53 : vector<2x1xf32> to vector<2x1xf32>
    %187 = vector.broadcast %186 : vector<2x1xf32> to vector<2x128xf32>
    %188 = vector.broadcast %cst_59 : f32 to vector<2x128xf32>
    %189 = arith.select %185, %187, %188 : vector<2x128xi1>, vector<2x128xf32>
    %190 = arith.addf %183, %189 : vector<2x128xf32>
    %c3_i32_60 = arith.constant 3 : i32
    %191 = vector.broadcast %c3_i32_60 : i32 to vector<2x128xi32>
    %192 = arith.cmpi eq, %168, %191 : vector<2x128xi32>
    %cst_61 = arith.constant 0.000000e+00 : f32
    %193 = vector.shape_cast %161 : vector<2x1xf32> to vector<2x1xf32>
    %194 = vector.broadcast %193 : vector<2x1xf32> to vector<2x128xf32>
    %195 = vector.broadcast %cst_61 : f32 to vector<2x128xf32>
    %196 = arith.select %192, %194, %195 : vector<2x128xi1>, vector<2x128xf32>
    %197 = arith.addf %190, %196 : vector<2x128xf32>
    %c4_i32_62 = arith.constant 4 : i32
    %198 = vector.broadcast %c4_i32_62 : i32 to vector<2x128xi32>
    %199 = arith.cmpi eq, %168, %198 : vector<2x128xi32>
    %cst_63 = arith.constant 0.000000e+00 : f32
    %200 = vector.shape_cast %167 : vector<2x1xf32> to vector<2x1xf32>
    %201 = vector.broadcast %200 : vector<2x1xf32> to vector<2x128xf32>
    %202 = vector.broadcast %cst_63 : f32 to vector<2x128xf32>
    %203 = arith.select %199, %201, %202 : vector<2x128xi1>, vector<2x128xf32>
    %204 = arith.addf %197, %203 : vector<2x128xf32>
    %c0_64 = arith.constant 0 : index
    %c0_65 = arith.constant 0 : index
    %205 = vector.load %arg11[%c0_64, %c0_65] : memref<2x128xf32, #tpu.memory_space<vmem>>, vector<2x128xf32>
    tpu.vector_store %arg11[%c0_64, %c0_65], %204 {strides = array<i32>} : memref<2x128xf32, #tpu.memory_space<vmem>>, vector<2x128xf32>,
    return
  }
}

</mosaic_0001>

<llo_original>
// kernel: forward.1
$region0: #{forward.1}
  #allocation0 [shape = 'u32[]', space=smem, size = 0x4, offset = 0x4, fixed_abs, tag = 'smem constant byte address 0x4 - core index']
  #allocation1 [shape = 'u32[144,128]{1,0:T(1,128)}', space=vmem, size = 0x12000, scoped, tag = 'internal scratch']
  %s0 = inlined_call_operand.vmem [shape: f32[2,128], index: 0, kind: input, shape index: {}]
  %s1 = inlined_call_operand.vmem [shape: s32[2,1], index: 1, kind: input, shape index: {}]
  %s2 = inlined_call_operand.vmem [shape: f32[1,32], index: 2, kind: input, shape index: {}]
  %s3 = inlined_call_operand.hbm [shape: f32[32,64], index: 3, kind: input, shape index: {}]
  %s4 = inlined_call_operand.vmem [shape: f32[1,64], index: 4, kind: input, shape index: {}]
  %s5 = inlined_call_operand.vmem [shape: f32[64,64], index: 5, kind: input, shape index: {}]
  %s6 = inlined_call_operand.vmem [shape: f32[1,64], index: 6, kind: input, shape index: {}]
  %s7 = inlined_call_operand.hbm [shape: f32[64,64], index: 7, kind: input, shape index: {}]
  %s8 = inlined_call_operand.vmem [shape: f32[1,64], index: 8, kind: input, shape index: {}]
  %s9 = inlined_call_operand.hbm [shape: f32[64,80], index: 9, kind: input, shape index: {}]
  %s10 = inlined_call_operand.vmem [shape: f32[1,80], index: 10, kind: input, shape index: {}]
  %s11 = inlined_call_operand.vmem [shape: f32[2,128], index: 11, kind: output, shape index: {0}]
  %s12 = inlined_call_operand.hbm [shape: f32[1,8], index: 12, kind: output, shape index: {1}]
  %13 = xla_tuple %s11, %s12
  %s14 = sld [smem:[#allocation0]]
  $region74: #{forward.1} parent=0
    _
  %s16 = ssub.s32 1, %s14
  %s17 = scalar_select 0, %s16, %s14
  $region1: #{forward.1} parent=0
    #allocation2 [shape = 'u8[16384]{0}', space=vmem, size = 0x4000, scoped, tag = 'input window, operand 3, single buffered']
    #allocation3 [shape = 's32[1]{0}', space=sflag, size = 0x4, scoped, tag = 'scoped memory for forward.1']
    #allocation4 [shape = 's32[1]{0}', space=sflag, size = 0x4, scoped, tag = 'scoped memory for forward.1']
    #allocation5 [shape = 'u8[32768]{0}', space=vmem, size = 0x8000, scoped, tag = 'input window, operand 7, single buffered']
    #allocation6 [shape = 's32[1]{0}', space=sflag, size = 0x4, scoped, tag = 'scoped memory for forward.1']
    #allocation7 [shape = 'u8[32768]{0}', space=vmem, size = 0x8000, scoped, tag = 'input window, operand 9, single buffered']
    #allocation8 [shape = 'u8[512]{0}', space=vmem, size = 0x400, scoped, tag = 'output window, operand 1, single buffered']
    %18 = vsyncpa [#allocation3], 0
    %19 = vsyncpa [#allocation6], 0
    %20 = vsyncpa [#allocation4], 0
    // Predicated region
    $region2: #{forward.1} parent=1 // pred_check
      _
    $region3: #{forward.1} parent=1 // pred_check_branch
      %22 = sbr.rel (0) target = $region5
    $region4: #{forward.1} parent=1 // pred_region
      _
    $region5: #{forward.1} parent=1 // pred_fallthru
      _
    // Predicated region
    $region6: #{forward.1} parent=1 // pred_check
      _
    $region7: #{forward.1} parent=1 // pred_check_branch
      %24 = sbr.rel (0) target = $region9
    $region8: #{forward.1} parent=1 // pred_region
      _
    $region9: #{forward.1} parent=1 // pred_fallthru
      _
    // Predicated region
    $region10: #{forward.1} parent=1 // pred_check
      _
    $region11: #{forward.1} parent=1 // pred_check_branch
      %26 = sbr.rel (0) target = $region13
    $region12: #{forward.1} parent=1 // pred_region
      _
    $region13: #{forward.1} parent=1 // pred_fallthru
      _
    // Predicated region
    $region14: #{forward.1} parent=1 // pred_check
      _
    $region15: #{forward.1} parent=1 // pred_check_branch
      %28 = sbr.rel (0) target = $region17
    $region16: #{forward.1} parent=1 // pred_region
      %s30 = ssub.s32 512, 512
      %31 = vsyncadd [#allocation3], %s30
      %s32 = sshll.u32 [#allocation2], 4
      %s33 = int_to_ptr.vmem [resolvable:$true] %s32
      %38 = dma.hbm_to_vmem [thread:$0]  %s3, 512, %s33, [#allocation3], 128, 128, 8
    $region17: #{forward.1} parent=1 // pred_fallthru
      _
    // Predicated region
    $region18: #{forward.1} parent=1 // pred_check
      _
    $region19: #{forward.1} parent=1 // pred_check_branch
      %40 = sbr.rel (0) target = $region21
    $region20: #{forward.1} parent=1 // pred_region
      _
    $region21: #{forward.1} parent=1 // pred_fallthru
      _
    // Predicated region
    $region22: #{forward.1} parent=1 // pred_check
      _
    $region23: #{forward.1} parent=1 // pred_check_branch
      %42 = sbr.rel (0) target = $region25
    $region24: #{forward.1} parent=1 // pred_region
      _
    $region25: #{forward.1} parent=1 // pred_fallthru
      _
    // Predicated region
    $region26: #{forward.1} parent=1 // pred_check
      _
    $region27: #{forward.1} parent=1 // pred_check_branch
      %44 = sbr.rel (0) target = $region29
    $region28: #{forward.1} parent=1 // pred_region
      _
    $region29: #{forward.1} parent=1 // pred_fallthru
      _
    // Predicated region
    $region30: #{forward.1} parent=1 // pred_check
      _
    $region31: #{forward.1} parent=1 // pred_check_branch
      %46 = sbr.rel (0) target = $region33
    $region32: #{forward.1} parent=1 // pred_region
      %s48 = ssub.s32 1024, 1024
      %49 = vsyncadd [#allocation6], %s48
      %s50 = sshll.u32 [#allocation5], 4
      %s51 = int_to_ptr.vmem [resolvable:$true] %s50
      %56 = dma.hbm_to_vmem [thread:$0]  %s7, 1024, %s51, [#allocation6], 128, 128, 8
    $region33: #{forward.1} parent=1 // pred_fallthru
      _
    // Predicated region
    $region34: #{forward.1} parent=1 // pred_check
      _
    $region35: #{forward.1} parent=1 // pred_check_branch
      %58 = sbr.rel (0) target = $region37
    $region36: #{forward.1} parent=1 // pred_region
      _
    $region37: #{forward.1} parent=1 // pred_fallthru
      _
    // Predicated region
    $region38: #{forward.1} parent=1 // pred_check
      _
    $region39: #{forward.1} parent=1 // pred_check_branch
      %60 = sbr.rel (0) target = $region41
    $region40: #{forward.1} parent=1 // pred_region
      %s62 = ssub.s32 1024, 1024
      %63 = vsyncadd [#allocation6], %s62
      %s64 = sshll.u32 [#allocation7], 4
      %s65 = int_to_ptr.vmem [resolvable:$true] %s64
      %70 = dma.hbm_to_vmem [thread:$0]  %s9, 1024, %s65, [#allocation6], 128, 128, 8
    $region41: #{forward.1} parent=1 // pred_fallthru
      _
    // Predicated region
    $region42: #{forward.1} parent=1 // pred_check
      _
    $region43: #{forward.1} parent=1 // pred_check_branch
      %72 = sbr.rel (0) target = $region45
    $region44: #{forward.1} parent=1 // pred_region
      _
    $region45: #{forward.1} parent=1 // pred_fallthru
      _
    // Predicated region
    $region46: #{forward.1} parent=1 // pred_check
      _
    $region47: #{forward.1} parent=1 // pred_check_branch
      %74 = sbr.rel (0) target = $region49
    $region48: #{forward.1} parent=1 // pred_region
      %75 = dma.done [#allocation3], 512
    $region49: #{forward.1} parent=1 // pred_fallthru
      _
    // Predicated region
    $region50: #{forward.1} parent=1 // pred_check
      _
    $region51: #{forward.1} parent=1 // pred_check_branch
      %77 = sbr.rel (0) target = $region53
    $region52: #{forward.1} parent=1 // pred_region
      %78 = dma.done [#allocation6], 1024
    $region53: #{forward.1} parent=1 // pred_fallthru
      _
    // Predicated region
    $region54: #{forward.1} parent=1 // pred_check
      _
    $region55: #{forward.1} parent=1 // pred_check_branch
      %80 = sbr.rel (0) target = $region57
    $region56: #{forward.1} parent=1 // pred_region
      %81 = dma.done [#allocation6], 1024
    $region57: #{forward.1} parent=1 // pred_fallthru
      _
    %v82 = vld [vmem:[%s0] sm:$0x3]
    %v83 = vld [vmem:[%s2] sm:$0x1]
    %v84 = vld [vmem:[#allocation2] sm:$0xff]
    %v85 = vld [vmem:[#allocation2 + $0x8] sm:$0xff]
    %v86 = vld [vmem:[#allocation2 + $0x10] sm:$0xff]
    %v87 = vld [vmem:[#allocation2 + $0x18] sm:$0xff]
    %v88 = vld [vmem:[%s4] sm:$0x1]
    %vm89 = vcmask 261120
    %v91 = vsel %vm89, %v83, 0
    %93 = vmatprep.subr.mxu0 0.0
    %94 = vmatpush1.msra.mxu0 %v84
    %95 = vmatprep.subr.mxu0 0.0
    %96 = vmatpush1.msra.mxu0 %v85
    %97 = vmatprep.subr.mxu0 0.0
    %98 = vmatpush1.msra.mxu0 %v86
    %99 = vmatprep.subr.mxu0 0.0
    %100 = vmatpush1.msra.mxu0 %v87
    %101 = vmatprep.subr.mxu0 0.0
    %102 = vmatpush1.msra.mxu0 0.0
    %103 = vmatprep.subr.mxu0 0.0
    %104 = vmatpush1.msra.mxu0 0.0
    %105 = vmatprep.subr.mxu0 0.0
    %106 = vmatpush1.msra.mxu0 0.0
    %107 = vmatprep.subr.mxu0 0.0
    %108 = vmatpush1.msra.mxu0 0.0
    %109 = vmatprep.subr.mxu0 0.0
    %110 = vmatpush1.msra.mxu0 0.0
    %111 = vmatprep.subr.mxu0 0.0
    %112 = vmatpush1.msra.mxu0 0.0
    %113 = vmatprep.subr.mxu0 0.0
    %114 = vmatpush1.msra.mxu0 0.0
    %115 = vmatprep.subr.mxu0 0.0
    %116 = vmatpush1.msra.mxu0 0.0
    %117 = vmatprep.subr.mxu0 0.0
    %118 = vmatpush1.msra.mxu0 0.0
    %119 = vmatprep.subr.mxu0 0.0
    %120 = vmatpush1.msra.mxu0 0.0
    %121 = vmatprep.subr.mxu0 0.0
    %122 = vmatpush1.msra.mxu0 0.0
    %123 = vmatprep.subr.mxu0 0.0
    %124 = vmatpush1.msra.mxu0 0.0
    %125 = vmatprep.subr.mxu0 0.0
    %126 = vmatpush1.msra.mxu0 0.0
    %127 = vmatprep.subr.mxu0 0.0
    %128 = vmatpush1.msra.mxu0 0.0
    %129 = vmatprep.subr.mxu0 0.0
    %130 = vmatpush1.msra.mxu0 0.0
    %131 = vmatprep.subr.mxu0 0.0
    %132 = vmatpush1.msra.mxu0 0.0
    %133 = vmatprep.subr.mxu0 0.0
    %134 = vmatpush1.msra.mxu0 0.0
    %135 = vmatprep.subr.mxu0 0.0
    %136 = vmatpush1.msra.mxu0 0.0
    %137 = vmatprep.subr.mxu0 0.0
    %138 = vmatpush1.msra.mxu0 0.0
    %139 = vmatprep.subr.mxu0 0.0
    %140 = vmatpush1.msra.mxu0 0.0
    %141 = vmatprep.subr.mxu0 0.0
    %142 = vmatpush1.msra.mxu0 0.0
    %143 = vmatprep.subr.mxu0 0.0
    %144 = vmatpush1.msra.mxu0 0.0
    %145 = vmatprep.subr.mxu0 0.0
    %146 = vmatpush1.msra.mxu0 0.0
    %147 = vmatprep.subr.mxu0 0.0
    %148 = vmatpush1.msra.mxu0 0.0
    %149 = vmatprep.subr.mxu0 0.0
    %150 = vmatpush1.msra.mxu0 0.0
    %151 = vmatprep.subr.mxu0 0.0
    %152 = vmatpush1.msra.mxu0 0.0
    %153 = vmatprep.subr.mxu0 0.0
    %154 = vmatpush1.msra.mxu0 0.0
    %155 = vmatprep.subr.mxu0 0.0
    %156 = vmatpush1.msra.mxu0 0.0
    %157 = vmatprep.mubr.f32.mxu0 0.0
    %158 = vmatmul.mubr.f32.gmra.mrb[0].mxu0 %v91
    %v159 = vpop.f32.mrb[0].mxu0
    %v160 = vadd.f32 %v88, %v159
    %v161 = vpop.f32.mrb[0].mxu0
    %162 = vdwg.mxu0
    %v163 = vmax.f32 %v160, 0.0
    %v164 = vld [vmem:[%s5] sm:$0xff]
    %v165 = vld [vmem:[%s5 + $0x8] sm:$0xff]
    %v166 = vld [vmem:[%s5 + $0x10] sm:$0xff]
    %v167 = vld [vmem:[%s5 + $0x18] sm:$0xff]
    %v168 = vld [vmem:[%s5 + $0x20] sm:$0xff]
    %v169 = vld [vmem:[%s5 + $0x28] sm:$0xff]
    %v170 = vld [vmem:[%s5 + $0x30] sm:$0xff]
    %v171 = vld [vmem:[%s5 + $0x38] sm:$0xff]
    %v172 = vld [vmem:[%s6] sm:$0x1]
    %vm173 = vcmask 523264
    %v175 = vsel %vm173, %v163, 0
    %177 = vmatprep.subr.mxu0 0.0
    %178 = vmatpush1.msra.mxu0 %v164
    %179 = vmatprep.subr.mxu0 0.0
    %180 = vmatpush1.msra.mxu0 %v165
    %181 = vmatprep.subr.mxu0 0.0
    %182 = vmatpush1.msra.mxu0 %v166
    %183 = vmatprep.subr.mxu0 0.0
    %184 = vmatpush1.msra.mxu0 %v167
    %185 = vmatprep.subr.mxu0 0.0
    %186 = vmatpush1.msra.mxu0 %v168
    %187 = vmatprep.subr.mxu0 0.0
    %188 = vmatpush1.msra.mxu0 %v169
    %189 = vmatprep.subr.mxu0 0.0
    %190 = vmatpush1.msra.mxu0 %v170
    %191 = vmatprep.subr.mxu0 0.0
    %192 = vmatpush1.msra.mxu0 %v171
    %193 = vmatprep.subr.mxu0 0.0
    %194 = vmatpush1.msra.mxu0 0.0
    %195 = vmatprep.subr.mxu0 0.0
    %196 = vmatpush1.msra.mxu0 0.0
    %197 = vmatprep.subr.mxu0 0.0
    %198 = vmatpush1.msra.mxu0 0.0
    %199 = vmatprep.subr.mxu0 0.0
    %200 = vmatpush1.msra.mxu0 0.0
    %201 = vmatprep.subr.mxu0 0.0
    %202 = vmatpush1.msra.mxu0 0.0
    %203 = vmatprep.subr.mxu0 0.0
    %204 = vmatpush1.msra.mxu0 0.0
    %205 = vmatprep.subr.mxu0 0.0
    %206 = vmatpush1.msra.mxu0 0.0
    %207 = vmatprep.subr.mxu0 0.0
    %208 = vmatpush1.msra.mxu0 0.0
    %209 = vmatprep.subr.mxu0 0.0
    %210 = vmatpush1.msra.mxu0 0.0
    %211 = vmatprep.subr.mxu0 0.0
    %212 = vmatpush1.msra.mxu0 0.0
    %213 = vmatprep.subr.mxu0 0.0
    %214 = vmatpush1.msra.mxu0 0.0
    %215 = vmatprep.subr.mxu0 0.0
    %216 = vmatpush1.msra.mxu0 0.0
    %217 = vmatprep.subr.mxu0 0.0
    %218 = vmatpush1.msra.mxu0 0.0
    %219 = vmatprep.subr.mxu0 0.0
    %220 = vmatpush1.msra.mxu0 0.0
    %221 = vmatprep.subr.mxu0 0.0
    %222 = vmatpush1.msra.mxu0 0.0
    %223 = vmatprep.subr.mxu0 0.0
    %224 = vmatpush1.msra.mxu0 0.0
    %225 = vmatprep.subr.mxu0 0.0
    %226 = vmatpush1.msra.mxu0 0.0
    %227 = vmatprep.subr.mxu0 0.0
    %228 = vmatpush1.msra.mxu0 0.0
    %229 = vmatprep.subr.mxu0 0.0
    %230 = vmatpush1.msra.mxu0 0.0
    %231 = vmatprep.subr.mxu0 0.0
    %232 = vmatpush1.msra.mxu0 0.0
    %233 = vmatprep.subr.mxu0 0.0
    %234 = vmatpush1.msra.mxu0 0.0
    %235 = vmatprep.subr.mxu0 0.0
    %236 = vmatpush1.msra.mxu0 0.0
    %237 = vmatprep.subr.mxu0 0.0
    %238 = vmatpush1.msra.mxu0 0.0
    %239 = vmatprep.subr.mxu0 0.0
    %240 = vmatpush1.msra.mxu0 0.0
    %241 = vmatprep.mubr.f32.mxu0 0.0
    %242 = vmatmul.mubr.f32.gmra.mrb[0].mxu0 %v175
    %v243 = vpop.f32.mrb[0].mxu0
    %v244 = vadd.f32 %v172, %v243
    %v245 = vpop.f32.mrb[0].mxu0
    %246 = vdwg.mxu0
    %v247 = vmax.f32 %v244, 0.0
    %v248 = vld [vmem:[#allocation5] sm:$0xff]
    %v249 = vld [vmem:[#allocation5 + $0x8] sm:$0xff]
    %v250 = vld [vmem:[#allocation5 + $0x10] sm:$0xff]
    %v251 = vld [vmem:[#allocation5 + $0x18] sm:$0xff]
    %v252 = vld [vmem:[#allocation5 + $0x20] sm:$0xff]
    %v253 = vld [vmem:[#allocation5 + $0x28] sm:$0xff]
    %v254 = vld [vmem:[#allocation5 + $0x30] sm:$0xff]
    %v255 = vld [vmem:[#allocation5 + $0x38] sm:$0xff]
    %v256 = vld [vmem:[%s8] sm:$0x1]
    %v258 = vsel %vm173, %v247, 0
    %260 = vmatprep.subr.mxu0 0.0
    %261 = vmatpush1.msra.mxu0 %v248
    %262 = vmatprep.subr.mxu0 0.0
    %263 = vmatpush1.msra.mxu0 %v249
    %264 = vmatprep.subr.mxu0 0.0
    %265 = vmatpush1.msra.mxu0 %v250
    %266 = vmatprep.subr.mxu0 0.0
    %267 = vmatpush1.msra.mxu0 %v251
    %268 = vmatprep.subr.mxu0 0.0
    %269 = vmatpush1.msra.mxu0 %v252
    %270 = vmatprep.subr.mxu0 0.0
    %271 = vmatpush1.msra.mxu0 %v253
    %272 = vmatprep.subr.mxu0 0.0
    %273 = vmatpush1.msra.mxu0 %v254
    %274 = vmatprep.subr.mxu0 0.0
    %275 = vmatpush1.msra.mxu0 %v255
    %276 = vmatprep.subr.mxu0 0.0
    %277 = vmatpush1.msra.mxu0 0.0
    %278 = vmatprep.subr.mxu0 0.0
    %279 = vmatpush1.msra.mxu0 0.0
    %280 = vmatprep.subr.mxu0 0.0
    %281 = vmatpush1.msra.mxu0 0.0
    %282 = vmatprep.subr.mxu0 0.0
    %283 = vmatpush1.msra.mxu0 0.0
    %284 = vmatprep.subr.mxu0 0.0
    %285 = vmatpush1.msra.mxu0 0.0
    %286 = vmatprep.subr.mxu0 0.0
    %287 = vmatpush1.msra.mxu0 0.0
    %288 = vmatprep.subr.mxu0 0.0
    %289 = vmatpush1.msra.mxu0 0.0
    %290 = vmatprep.subr.mxu0 0.0
    %291 = vmatpush1.msra.mxu0 0.0
    %292 = vmatprep.subr.mxu0 0.0
    %293 = vmatpush1.msra.mxu0 0.0
    %294 = vmatprep.subr.mxu0 0.0
    %295 = vmatpush1.msra.mxu0 0.0
    %296 = vmatprep.subr.mxu0 0.0
    %297 = vmatpush1.msra.mxu0 0.0
    %298 = vmatprep.subr.mxu0 0.0
    %299 = vmatpush1.msra.mxu0 0.0
    %300 = vmatprep.subr.mxu0 0.0
    %301 = vmatpush1.msra.mxu0 0.0
    %302 = vmatprep.subr.mxu0 0.0
    %303 = vmatpush1.msra.mxu0 0.0
    %304 = vmatprep.subr.mxu0 0.0
    %305 = vmatpush1.msra.mxu0 0.0
    %306 = vmatprep.subr.mxu0 0.0
    %307 = vmatpush1.msra.mxu0 0.0
    %308 = vmatprep.subr.mxu0 0.0
    %309 = vmatpush1.msra.mxu0 0.0
    %310 = vmatprep.subr.mxu0 0.0
    %311 = vmatpush1.msra.mxu0 0.0
    %312 = vmatprep.subr.mxu0 0.0
    %313 = vmatpush1.msra.mxu0 0.0
    %314 = vmatprep.subr.mxu0 0.0
    %315 = vmatpush1.msra.mxu0 0.0
    %316 = vmatprep.subr.mxu0 0.0
    %317 = vmatpush1.msra.mxu0 0.0
    %318 = vmatprep.subr.mxu0 0.0
    %319 = vmatpush1.msra.mxu0 0.0
    %320 = vmatprep.subr.mxu0 0.0
    %321 = vmatpush1.msra.mxu0 0.0
    %322 = vmatprep.subr.mxu0 0.0
    %323 = vmatpush1.msra.mxu0 0.0
    %324 = vmatprep.mubr.f32.mxu0 0.0
    %325 = vmatmul.mubr.f32.gmra.mrb[0].mxu0 %v258
    %v326 = vpop.f32.mrb[0].mxu0
    %v327 = vadd.f32 %v256, %v326
    %v328 = vpop.f32.mrb[0].mxu0
    %329 = vdwg.mxu0
    %v330 = vmax.f32 %v327, 0.0
    %v331 = vld [vmem:[#allocation7] sm:$0xff]
    %v332 = vld [vmem:[#allocation7 + $0x8] sm:$0xff]
    %v333 = vld [vmem:[#allocation7 + $0x10] sm:$0xff]
    %v334 = vld [vmem:[#allocation7 + $0x18] sm:$0xff]
    %v335 = vld [vmem:[#allocation7 + $0x20] sm:$0xff]
    %v336 = vld [vmem:[#allocation7 + $0x28] sm:$0xff]
    %v337 = vld [vmem:[#allocation7 + $0x30] sm:$0xff]
    %v338 = vld [vmem:[#allocation7 + $0x38] sm:$0xff]
    %v339 = vld [vmem:[%s10] sm:$0x1]
    %v341 = vsel %vm173, %v330, 0
    %343 = vmatprep.subr.mxu0 0.0
    %344 = vmatpush1.msra.mxu0 %v331
    %345 = vmatprep.subr.mxu0 0.0
    %346 = vmatpush1.msra.mxu0 %v332
    %347 = vmatprep.subr.mxu0 0.0
    %348 = vmatpush1.msra.mxu0 %v333
    %349 = vmatprep.subr.mxu0 0.0
    %350 = vmatpush1.msra.mxu0 %v334
    %351 = vmatprep.subr.mxu0 0.0
    %352 = vmatpush1.msra.mxu0 %v335
    %353 = vmatprep.subr.mxu0 0.0
    %354 = vmatpush1.msra.mxu0 %v336
    %355 = vmatprep.subr.mxu0 0.0
    %356 = vmatpush1.msra.mxu0 %v337
    %357 = vmatprep.subr.mxu0 0.0
    %358 = vmatpush1.msra.mxu0 %v338
    %359 = vmatprep.subr.mxu0 0.0
    %360 = vmatpush1.msra.mxu0 0.0
    %361 = vmatprep.subr.mxu0 0.0
    %362 = vmatpush1.msra.mxu0 0.0
    %363 = vmatprep.subr.mxu0 0.0
    %364 = vmatpush1.msra.mxu0 0.0
    %365 = vmatprep.subr.mxu0 0.0
    %366 = vmatpush1.msra.mxu0 0.0
    %367 = vmatprep.subr.mxu0 0.0
    %368 = vmatpush1.msra.mxu0 0.0
    %369 = vmatprep.subr.mxu0 0.0
    %370 = vmatpush1.msra.mxu0 0.0
    %371 = vmatprep.subr.mxu0 0.0
    %372 = vmatpush1.msra.mxu0 0.0
    %373 = vmatprep.subr.mxu0 0.0
    %374 = vmatpush1.msra.mxu0 0.0
    %375 = vmatprep.subr.mxu0 0.0
    %376 = vmatpush1.msra.mxu0 0.0
    %377 = vmatprep.subr.mxu0 0.0
    %378 = vmatpush1.msra.mxu0 0.0
    %379 = vmatprep.subr.mxu0 0.0
    %380 = vmatpush1.msra.mxu0 0.0
    %381 = vmatprep.subr.mxu0 0.0
    %382 = vmatpush1.msra.mxu0 0.0
    %383 = vmatprep.subr.mxu0 0.0
    %384 = vmatpush1.msra.mxu0 0.0
    %385 = vmatprep.subr.mxu0 0.0
    %386 = vmatpush1.msra.mxu0 0.0
    %387 = vmatprep.subr.mxu0 0.0
    %388 = vmatpush1.msra.mxu0 0.0
    %389 = vmatprep.subr.mxu0 0.0
    %390 = vmatpush1.msra.mxu0 0.0
    %391 = vmatprep.subr.mxu0 0.0
    %392 = vmatpush1.msra.mxu0 0.0
    %393 = vmatprep.subr.mxu0 0.0
    %394 = vmatpush1.msra.mxu0 0.0
    %395 = vmatprep.subr.mxu0 0.0
    %396 = vmatpush1.msra.mxu0 0.0
    %397 = vmatprep.subr.mxu0 0.0
    %398 = vmatpush1.msra.mxu0 0.0
    %399 = vmatprep.subr.mxu0 0.0
    %400 = vmatpush1.msra.mxu0 0.0
    %401 = vmatprep.subr.mxu0 0.0
    %402 = vmatpush1.msra.mxu0 0.0
    %403 = vmatprep.subr.mxu0 0.0
    %404 = vmatpush1.msra.mxu0 0.0
    %405 = vmatprep.subr.mxu0 0.0
    %406 = vmatpush1.msra.mxu0 0.0
    %407 = vmatprep.mubr.f32.mxu0 0.0
    %408 = vmatmul.mubr.f32.gmra.mrb[0].mxu0 %v341
    %v409 = vpop.f32.mrb[0].mxu0
    %v410 = vadd.f32 %v339, %v409
    %v411 = vpop.f32.mrb[0].mxu0
    %412 = vdwg.mxu0
    %vm413 = vcmask 57344
    %414 = vst.msk [vmem:[#allocation8] sm:$0x1] %vm413, %v410
    %v415 = vld [vmem:[%s1] sm:$0x3]
    %v416 = vlaneseq
    %v417 = vand.u32 %v416, 127
    %v418 = vlaneseq
    %v419 = vshrl.u32 %v418, 7
    %v420 = vmul.u32 %v419, 4
    %421 = vset.pattern.permute.xlu0 0
    %422 = vperm.xlu0 %421, %v415
    %v423 = vpop.permute.xlu0 %422
    %v424 = vadd.s32 %v420, %v423
    %vm425 = vcmp.eq.s32.totalorder %v417, %v424
    %v426 = vlaneseq
    %v427 = vshrl.u32 %v426, 7
    %v428 = vsub.s32 0, %v427
    %v429 = vrot.slane %v410, %v428
    %431 = vrot.lane.b32.xlu0 %v429, 120
    %v432 = vpop.permute.xlu0 %431
    %v434 = vsel %vm425, %v432, 0.0
    %vm435 = vcmask 58368
    %v436 = vsel %vm435, %v434, 0.0
    %437 = vadd.xlane.f32.xlu0 %v436
    %v438 = vpop.xlane.xlu0 %437
    %v439 = vsub.f32 0.0, %v438
    %v440 = vmul.f32 %v439, 1.442695
    %v441 = vpow.pop %v440
    %v442 = vadd.f32 %v441, 1.0
    %v443 = vrcp.pop %v442
    %v444 = vmul.f32 1.0, %v443
    %vm445 = vcmp.lt.f32.partialorder %v82, %v444
    %vm446 = vcmp.ge.s32.totalorder %v417, %v420
    %v447 = vadd.s32 %v419, 1
    %v448 = vmul.u32 %v447, 4
    %vm449 = vcmp.lt.s32.totalorder %v417, %v448
    %vm450 = vmand %vm446, %vm449
    %v451 = vsel %vm450, %v429, -1e+30
    %v452 = vsel %vm435, %v451, -inf
    %453 = vmax.xlane.f32.xlu0 %v452
    %v454 = vpop.xlane.xlu0 %453
    %vm455 = vcmp.eq.f32.partialorder %v451, %v454
    %vm456 = vmand %vm455, %vm450
    %v457 = vsel %vm456, %v417, 8
    %v458 = vsel %vm435, %v457, 2147483647
    %v459 = vand.u32 %v458, 65535
    %v460 = vshra.s32 %v458, 16
    %v461 = vcvt.s32.f32 %v459
    %v462 = vcvt.s32.f32 %v460
    %463 = vmin.xlane.f32.xlu0 %v462
    %v464 = vpop.xlane.xlu0 %463
    %vm465 = vcmp.eq.f32.partialorder %v462, %v464
    %v466 = vsel %vm465, %v461, inf
    %467 = vmin.xlane.f32.xlu0 %v466
    %v468 = vpop.xlane.xlu0 %467
    %v469 = vcvt.f32.s32 %v468
    %v470 = vcvt.f32.s32 %v464
    %v471 = vshll.u32 %v470, 16
    %v472 = vadd.s32 %v471, %v469
    %v473 = vsub.s32 %v472, %v420
    %v474 = vmul.f32 %v82, 4.0
    %v475 = vfloor.f32 %v474
    %v476 = vcvt.f32.s32.to.zero.pseudo %v475
    %vm477 = vcmp.lt.s32.totalorder %v476, 3
    %v478 = vsel %vm477, %v476, 3
    %vm479 = vcmp.lt.f32.partialorder %v82, 0.9999934
    %480 = vrot.lane.b32.xlu0 %v478, 127
    %v481 = vpop.permute.xlu0 %480
    %v482 = vsel %vm479, %v481, %v473
    %483 = vrot.lane.b32.xlu0 %v482, 127
    %v484 = vpop.permute.xlu0 %483
    %v485 = vsel %vm445, %v484, %v415
    %486 = vset.pattern.permute.xlu0 0
    %487 = vperm.xlu0 %486, %v485
    %v488 = vpop.permute.xlu0 %487
    %v489 = vadd.s32 %v420, %v488
    %v490 = vmul.u32 %v489, 8
    %vm491 = vcmp.ge.s32.totalorder %v417, %v490
    %v492 = vadd.s32 %v490, 8
    %vm493 = vcmp.lt.s32.totalorder %v417, %v492
    %vm494 = vmand %vm491, %vm493
    %495 = vrot.lane.b32.xlu0 %v429, 112
    %v496 = vpop.permute.xlu0 %495
    %v498 = vsel %vm494, %v496, 0.0
    %500 = vrot.lane.b32.xlu0 %v498, 120
    %v501 = vpop.permute.xlu0 %500
    %v503 = vadd.f32 %v498, %v501
    %504 = vrot.lane.b32.xlu0 %v498, 112
    %v505 = vpop.permute.xlu0 %504
    %v507 = vadd.f32 %v503, %v505
    %508 = vrot.lane.b32.xlu0 %v498, 104
    %v509 = vpop.permute.xlu0 %508
    %v511 = vadd.f32 %v507, %v509
    %512 = vrot.lane.b32.xlu0 %v498, 96
    %v513 = vpop.permute.xlu0 %512
    %v515 = vadd.f32 %v511, %v513
    %516 = vrot.lane.b32.xlu0 %v498, 88
    %v517 = vpop.permute.xlu0 %516
    %v519 = vadd.f32 %v515, %v517
    %520 = vrot.lane.b32.xlu0 %v498, 80
    %v521 = vpop.permute.xlu0 %520
    %v523 = vadd.f32 %v519, %v521
    %524 = vrot.lane.b32.xlu0 %v498, 72
    %v525 = vpop.permute.xlu0 %524
    %v527 = vadd.f32 %v523, %v525
    %v528 = vsel %vm435, %v527, -inf
    %529 = vmax.xlane.f32.xlu0 %v528
    %v530 = vpop.xlane.xlu0 %529
    %v531 = vsub.f32 %v527, %v530
    %v532 = vmul.f32 %v531, 1.442695
    %v533 = vpow.pop %v532
    %v534 = vsel %vm435, %v533, 0.0
    %535 = vadd.xlane.f32.xlu0 %v534
    %v536 = vpop.xlane.xlu0 %535
    %v537 = vrcp.pop %v536
    %v538 = vmul.f32 %v533, %v537
    %vm539 = vcmp.le.s32.totalorder %v419, %v417
    %v540 = vsel %vm539, 1, 0
    %v541 = vcvt.s32.f32 %v540
    %vm542 = vcmask 64512
    %v544 = vsel %vm542, %v538, 0
    %546 = vmatprep.subr.mxu0 0.0
    %547 = vmatpush1.msra.mxu0 %v541
    %548 = vmatprep.subr.mxu0 0.0
    %549 = vmatpush1.msra.mxu0 0.0
    %550 = vmatprep.subr.mxu0 0.0
    %551 = vmatpush1.msra.mxu0 0.0
    %552 = vmatprep.subr.mxu0 0.0
    %553 = vmatpush1.msra.mxu0 0.0
    %554 = vmatprep.subr.mxu0 0.0
    %555 = vmatpush1.msra.mxu0 0.0
    %556 = vmatprep.subr.mxu0 0.0
    %557 = vmatpush1.msra.mxu0 0.0
    %558 = vmatprep.subr.mxu0 0.0
    %559 = vmatpush1.msra.mxu0 0.0
    %560 = vmatprep.subr.mxu0 0.0
    %561 = vmatpush1.msra.mxu0 0.0
    %562 = vmatprep.subr.mxu0 0.0
    %563 = vmatpush1.msra.mxu0 0.0
    %564 = vmatprep.subr.mxu0 0.0
    %565 = vmatpush1.msra.mxu0 0.0
    %566 = vmatprep.subr.mxu0 0.0
    %567 = vmatpush1.msra.mxu0 0.0
    %568 = vmatprep.subr.mxu0 0.0
    %569 = vmatpush1.msra.mxu0 0.0
    %570 = vmatprep.subr.mxu0 0.0
    %571 = vmatpush1.msra.mxu0 0.0
    %572 = vmatprep.subr.mxu0 0.0
    %573 = vmatpush1.msra.mxu0 0.0
    %574 = vmatprep.subr.mxu0 0.0
    %575 = vmatpush1.msra.mxu0 0.0
    %576 = vmatprep.subr.mxu0 0.0
    %577 = vmatpush1.msra.mxu0 0.0
    %578 = vmatprep.subr.mxu0 0.0
    %579 = vmatpush1.msra.mxu0 0.0
    %580 = vmatprep.subr.mxu0 0.0
    %581 = vmatpush1.msra.mxu0 0.0
    %582 = vmatprep.subr.mxu0 0.0
    %583 = vmatpush1.msra.mxu0 0.0
    %584 = vmatprep.subr.mxu0 0.0
    %585 = vmatpush1.msra.mxu0 0.0
    %586 = vmatprep.subr.mxu0 0.0
    %587 = vmatpush1.msra.mxu0 0.0
    %588 = vmatprep.subr.mxu0 0.0
    %589 = vmatpush1.msra.mxu0 0.0
    %590 = vmatprep.subr.mxu0 0.0
    %591 = vmatpush1.msra.mxu0 0.0
    %592 = vmatprep.subr.mxu0 0.0
    %593 = vmatpush1.msra.mxu0 0.0
    %594 = vmatprep.subr.mxu0 0.0
    %595 = vmatpush1.msra.mxu0 0.0
    %596 = vmatprep.subr.mxu0 0.0
    %597 = vmatpush1.msra.mxu0 0.0
    %598 = vmatprep.subr.mxu0 0.0
    %599 = vmatpush1.msra.mxu0 0.0
    %600 = vmatprep.subr.mxu0 0.0
    %601 = vmatpush1.msra.mxu0 0.0
    %602 = vmatprep.subr.mxu0 0.0
    %603 = vmatpush1.msra.mxu0 0.0
    %604 = vmatprep.subr.mxu0 0.0
    %605 = vmatpush1.msra.mxu0 0.0
    %606 = vmatprep.subr.mxu0 0.0
    %607 = vmatpush1.msra.mxu0 0.0
    %608 = vmatprep.subr.mxu0 0.0
    %609 = vmatpush1.msra.mxu0 0.0
    %610 = vmatprep.mubr.f32.mxu0 0.0
    %611 = vmatmul.mubr.f32.gmra.mrb[0].mxu0 %v544
    %v612 = vpop.f32.mrb[0].mxu0
    %v613 = vadd.f32 0.0, %v612
    %v614 = vpop.f32.mrb[0].mxu0
    %615 = vdwg.mxu0
    %617 = vset.pattern.permute.xlu0 3
    %618 = vperm.xlu0 %617, %v82
    %v619 = vpop.permute.xlu0 %618
    %vm621 = vcmp.le.f32.partialorder %v613, %v619
    %v622 = vsel %vm621, 1, 0
    %v623 = vsel %vm435, %v622, 0
    %v624 = vand.u32 %v623, 65535
    %v625 = vshrl.u32 %v623, 16
    %v626 = vcvt.s32.f32 %v624
    %v627 = vcvt.s32.f32 %v625
    %628 = vadd.xlane.f32.xlu0 %v626
    %v629 = vpop.xlane.xlu0 %628
    %630 = vadd.xlane.f32.xlu0 %v627
    %v631 = vpop.xlane.xlu0 %630
    %v632 = vcvt.f32.s32 %v629
    %v633 = vcvt.f32.s32 %v631
    %v634 = vshll.u32 %v633, 16
    %v635 = vadd.s32 %v634, %v632
    %vm636 = vcmp.lt.s32.totalorder %v635, 7
    %v637 = vsel %vm636, %v635, 7
    %v638 = vsel %vm435, %v538, -inf
    %639 = vmax.xlane.f32.xlu0 %v638
    %v640 = vpop.xlane.xlu0 %639
    %v641 = vsub.f32 %v538, %v640
    %v642 = vmul.f32 %v641, 1.442695
    %v643 = vpow.pop %v642
    %v644 = vsel %vm435, %v643, 0.0
    %645 = vadd.xlane.f32.xlu0 %v644
    %v646 = vpop.xlane.xlu0 %645
    %v647 = vlog2.pop %v646
    %v648 = vmul.f32 %v647, 0.6931472
    %v649 = vadd.f32 %v640, %v648
    %v650 = vsub.f32 %v538, %v649
    %vm651 = vcmp.eq.s32.totalorder %v417, %v637
    %v652 = vsel %vm651, %v650, 0.0
    %v653 = vsel %vm435, %v652, 0.0
    %654 = vadd.xlane.f32.xlu0 %v653
    %v655 = vpop.xlane.xlu0 %654
    %v656 = vsub.f32 0.0, %v650
    %v657 = vmul.f32 %v650, 1.442695
    %v658 = vpow.pop %v657
    %v659 = vmul.f32 %v656, %v658
    %v660 = vsel %vm435, %v659, 0.0
    %661 = vadd.xlane.f32.xlu0 %v660
    %v662 = vpop.xlane.xlu0 %661
    %vm663 = vcmp.eq.s32.totalorder %v417, 0
    %v664 = vcvt.s32.f32 %v637
    %v665 = vsel %vm663, %v664, 0.0
    %vm666 = vcmp.eq.s32.totalorder %v417, 1
    %v667 = vcvt.s32.f32 %v485
    %669 = vset.pattern.permute.xlu0 0
    %670 = vperm.xlu0 %669, %v667
    %v671 = vpop.permute.xlu0 %670
    %v673 = vsel %vm666, %v671, 0.0
    %v674 = vadd.f32 %v665, %v673
    %vm675 = vcmp.eq.s32.totalorder %v417, 2
    %v676 = vsel %vm675, %v444, 0.0
    %v677 = vadd.f32 %v674, %v676
    %vm678 = vcmp.eq.s32.totalorder %v417, 3
    %v679 = vsel %vm678, %v655, 0.0
    %v680 = vadd.f32 %v677, %v679
    %vm681 = vcmp.eq.s32.totalorder %v417, 4
    %v682 = vsel %vm681, %v662, 0.0
    %v683 = vadd.f32 %v680, %v682
    %684 = vst [vmem:[%s11] sm:$0x3] %v683
    // Predicated region
    $region58: #{forward.1} parent=1 // pred_check
      _
    $region59: #{forward.1} parent=1 // pred_check_branch
      %686 = sbr.rel (0) target = $region61
    $region60: #{forward.1} parent=1 // pred_region
      _
    $region61: #{forward.1} parent=1 // pred_fallthru
      _
    // Predicated region
    $region62: #{forward.1} parent=1 // pred_check
      _
    $region63: #{forward.1} parent=1 // pred_check_branch
      %688 = sbr.rel (0) target = $region65
    $region64: #{forward.1} parent=1 // pred_region
      %s690 = ssub.s32 16, 16
      %691 = vsyncadd [#allocation4], %s690
      %s693 = sshll.u32 [#allocation8], 4
      %s694 = int_to_ptr.vmem [resolvable:$true] %s693
      %696 = dma.vmem_to_hbm [thread:$0]  %s694, 16, %s12, [#allocation4]
    $region65: #{forward.1} parent=1 // pred_fallthru
      _
    // Predicated region
    $region66: #{forward.1} parent=1 // pred_check
      _
    $region67: #{forward.1} parent=1 // pred_check_branch
      %698 = sbr.rel (0) target = $region69
    $region68: #{forward.1} parent=1 // pred_region
      _
    $region69: #{forward.1} parent=1 // pred_fallthru
      _
    // Predicated region
    $region70: #{forward.1} parent=1 // pred_check
      _
    $region71: #{forward.1} parent=1 // pred_check_branch
      %700 = sbr.rel (0) target = $region73
    $region72: #{forward.1} parent=1 // pred_region
      %701 = dma.done [#allocation4], 16
    $region73: #{forward.1} parent=1 // pred_fallthru
      _
    %702 = vsyncpa [#allocation3], 1
    %703 = vsyncpa [#allocation6], 1
    %704 = vsyncpa [#allocation4], 1

</llo_original>
